<compile_context>
chip_gen: v7x
topology: tpu7x:2x2x1
jax: 0.10.0
libtpu: 0.0.40
codegen_flags: <defaults>
</compile_context>

<pallas_src>
import functools

import jax
import jax.numpy as jnp
from jax.experimental import pallas as pl
from jax.experimental.pallas import tpu as pltpu

_LANE = 128


def _predictor_kernel(x_ref, w_ref, b_ref, g_ref, beta_ref, o_ref, *,
                      kernel_size, tile_t, halo, eps):
    # x_ref    : (C_in, T_ext)    zero-padded full time row of current batch element
    # w_ref    : (K, C_out, C_in) conv weight, tap-major
    # b_ref    : (C_out, 1)       conv bias
    # g_ref    : (C_out, 1)       layernorm gamma
    # beta_ref : (C_out, 1)       layernorm beta
    # o_ref    : (C_out, tile_t)  output time tile (tile_t % 128 == 0 -> lane-dense)
    t = pl.program_id(1)
    base = pl.multiple_of(t * tile_t, _LANE)
    win = tile_t + halo                      # lane-multiple extended window length

    # One aligned, lane-multiple load; all K taps come from XLU rolls of it.
    ext = x_ref[:, pl.ds(base, win)].astype(jnp.float32)        # (C_in, win)

    acc = None
    for d in range(kernel_size):             # K is tiny & static -> unrolled
        tap = ext if d == 0 else pltpu.roll(ext, shift=(win - d) % win, axis=1)
        tap = tap[:, :tile_t]                                   # aligned static slice
        w_d = w_ref[d].astype(jnp.float32)                      # (C_out, C_in)
        part = jnp.dot(w_d, tap, preferred_element_type=jnp.float32)
        acc = part if acc is None else acc + part               # (C_out, tile_t)

    # Conv bias + ReLU.
    h = jnp.maximum(acc + b_ref[...].astype(jnp.float32), 0.0)

    # LayerNorm over channels (sublane axis), fused single-pass statistics.
    inv_c = jnp.float32(1.0 / h.shape[0])
    s1 = jnp.sum(h, axis=0, keepdims=True)                      # (1, tile_t)
    s2 = jnp.sum(h * h, axis=0, keepdims=True)                  # (1, tile_t)
    mean = s1 * inv_c
    var = s2 * inv_c - mean * mean
    inv = jax.lax.rsqrt(var + eps)                              # EUP slot
    out = (h - mean) * inv * g_ref[...].astype(jnp.float32) \
        + beta_ref[...].astype(jnp.float32)

    # Dropout: identity at inference time.
    # TODO(synk): training-mode dropout parity would need pltpu.prng_seed /
    #             pltpu.prng_random_bits masking; not applicable in eval mode.
    o_ref[...] = out.astype(o_ref.dtype)


def fastspeech2_predictor_layer(x_nct, conv_weight, conv_bias, ln_weight, ln_bias,
                                *, eps=1e-5):
    """x_nct: (B, C_in, T) -> (B, C_out, T), matching the PyTorch module (eval mode)."""
    B, C_in, T = x_nct.shape
    C_out, C_in_w, K = conv_weight.shape
    assert C_in_w == C_in, "conv weight in-channels mismatch"
    if K % 2 == 0:
        # padding=(K-1)//2 with even K changes the output length in PyTorch.
        raise NotImplementedError("even kernel_size is not supported")
    pad = (K - 1) // 2

    # Lane-dense time tiling: pad T once to a multiple of 128; tile is the largest
    # of (512, 256, 128) dividing T_pad, bounding the per-step VMEM working set.
    t_pad = ((T + _LANE - 1) // _LANE) * _LANE
    tile_t = next(c for c in (512, 256, 128) if t_pad % c == 0)
    nt = t_pad // tile_t
    halo = _LANE                              # extra window columns, must cover K-1
    assert 2 * pad <= halo, "kernel_size too large for the fixed halo"
    t_ext = t_pad + halo

    # Single wrapper-side pad supplies BOTH the conv zero-halo and lane alignment,
    # so the kernel needs no boundary masks and no unaligned slices.
    x_p = jnp.pad(x_nct, ((0, 0), (0, 0), (pad, t_ext - pad - T)))

    # Tiny parameter reshapes only (no activation-sized transposes).
    w_koi = jnp.transpose(conv_weight, (2, 0, 1))               # (K, C_out, C_in)
    b2 = conv_bias.reshape(C_out, 1)
    g2 = ln_weight.reshape(C_out, 1)
    be2 = ln_bias.reshape(C_out, 1)

    kern = functools.partial(_predictor_kernel, kernel_size=K, tile_t=tile_t,
                             halo=halo, eps=eps)

    cost = pl.CostEstimate(
        flops=2 * B * C_out * C_in * K * t_pad,
        transcendentals=B * t_pad,
        bytes_accessed=4 * (B * C_in * t_ext + B * C_out * t_pad
                            + K * C_out * C_in + 3 * C_out))

    out_p = pl.pallas_call(
        kern,
        out_shape=jax.ShapeDtypeStruct((B, C_out, t_pad), x_nct.dtype),
        grid_spec=pltpu.PrefetchScalarGridSpec(
            num_scalar_prefetch=0,
            grid=(B, nt),
            in_specs=[
                # Full padded row per batch element; block index changes only with b,
                # so it is re-DMA'd only at batch transitions.
                pl.BlockSpec((None, C_in, t_ext), lambda b, t: (b, 0, 0)),
                pl.BlockSpec((K, C_out, C_in), lambda b, t: (0, 0, 0)),
                pl.BlockSpec((C_out, 1), lambda b, t: (0, 0)),
                pl.BlockSpec((C_out, 1), lambda b, t: (0, 0)),
                pl.BlockSpec((C_out, 1), lambda b, t: (0, 0)),
            ],
            out_specs=pl.BlockSpec((None, C_out, tile_t), lambda b, t: (b, 0, t)),
        ),
        compiler_params=pltpu.CompilerParams(
            dimension_semantics=("parallel", "parallel")),
        cost_estimate=cost,
    )(x_p, w_koi, b2, g2, be2)

    return out_p[:, :, :T]


def _reference(x_nct, conv_weight, conv_bias, ln_weight, ln_bias, eps=1e-5):
    """Pure-JAX reference mirroring the PyTorch forward (eval mode)."""
    K = conv_weight.shape[-1]
    pad = (K - 1) // 2
    y = jax.lax.conv_general_dilated(
        x_nct, conv_weight, window_strides=(1,), padding=[(pad, pad)],
        dimension_numbers=("NCH", "OIH", "NCH"))
    y = y + conv_bias[None, :, None]
    y = jnp.maximum(y, 0.0)
    y = jnp.transpose(y, (0, 2, 1))                              # (B, T, C)
    mean = y.mean(-1, keepdims=True)
    var = ((y - mean) ** 2).mean(-1, keepdims=True)
    y = (y - mean) / jnp.sqrt(var + eps) * ln_weight + ln_bias
    return jnp.transpose(y, (0, 2, 1))                           # (B, C, T)


def _run_case(key, batch, c_in, c_out, kernel_size, seq_len):
    k_x, k_w, k_b, k_g, k_beta = jax.random.split(key, 5)
    x = jax.random.normal(k_x, (batch, c_in, seq_len), jnp.float32)
    conv_weight = 0.2 * jax.random.normal(k_w, (c_out, c_in, kernel_size), jnp.float32)
    conv_bias = 0.1 * jax.random.normal(k_b, (c_out,), jnp.float32)
    ln_weight = 1.0 + 0.05 * jax.random.normal(k_g, (c_out,), jnp.float32)
    ln_bias = 0.05 * jax.random.normal(k_beta, (c_out,), jnp.float32)

    out = fastspeech2_predictor_layer(x, conv_weight, conv_bias, ln_weight, ln_bias)
    out = jax.block_until_ready(out)
    ref = _reference(x, conv_weight, conv_bias, ln_weight, ln_bias)
    assert out.shape == (batch, c_out, seq_len)
    assert jnp.allclose(out, ref, atol=1e-4, rtol=1e-4), "mismatch vs reference"


if __name__ == "__main__":
    key = jax.random.PRNGKey(0)
    k1, k2 = jax.random.split(key)
    # Config consistent with the module's __init__ (dropout is identity in eval mode).
    _run_case(k1, batch=2, c_in=32, c_out=32, kernel_size=3, seq_len=16)
    # Multi-tile time grid (T_pad=384 -> 3 tiles of 128) with a wider conv kernel.
    _run_case(k2, batch=1, c_in=24, c_out=40, kernel_size=5, seq_len=300)
    print("KERNEL_OK")
</pallas_src>

<mosaic_0001>
module attributes {stable_mosaic.version = 11 : i64} {
  func.func @_predictor_kernel(%arg0: i32, %arg1: i32, %arg2: memref<1x32x256xf32, #tpu.memory_space<vmem>>, %arg3: memref<3x32x32xf32, #tpu.memory_space<vmem>>, %arg4: memref<32x1xf32, #tpu.memory_space<vmem>>, %arg5: memref<32x1xf32, #tpu.memory_space<vmem>>, %arg6: memref<32x1xf32, #tpu.memory_space<vmem>>, %arg7: memref<1x32x128xf32, #tpu.memory_space<vmem>>) attributes {dimension_semantics = [#tpu.dimension_semantics<parallel>, #tpu.dimension_semantics<parallel>], iteration_bounds = array<i64: 2, 1>, scalar_prefetch = 0 : i64, scratch_operands = 0 : i64, tpu.core_type = #tpu.core_type<tc>, window_params = [{transform_indices = @transform_0, window_bounds = array<i64: 1, 32, 256>}, {pipeline_mode = #tpu.pipeline_mode<synchronous>, transform_indices = @transform_1, window_bounds = array<i64: 3, 32, 32>}, {pipeline_mode = #tpu.pipeline_mode<synchronous>, transform_indices = @transform_2, window_bounds = array<i64: 32, 1>}, {pipeline_mode = #tpu.pipeline_mode<synchronous>, transform_indices = @transform_3, window_bounds = array<i64: 32, 1>}, {pipeline_mode = #tpu.pipeline_mode<synchronous>, transform_indices = @transform_4, window_bounds = array<i64: 32, 1>}, {transform_indices = @transform_5, window_bounds = array<i64: 1, 32, 128>}]} {
    %c128_i32 = arith.constant 128 : i32
    %0 = arith.muli %arg1, %c128_i32 : i32
    %1 = tpu.assume_multiple %0, 128 : i32
    %c0 = arith.constant 0 : index
    %c0_0 = arith.constant 0 : index
    %2 = arith.index_cast %1 : i32 to index
    %3 = vector.load %arg2[%c0, %c0_0, %2] : memref<1x32x256xf32, #tpu.memory_space<vmem>>, vector<1x32x256xf32>
    %4 = vector.shape_cast %3 : vector<1x32x256xf32> to vector<32x256xf32>
    %5 = vector.extract_strided_slice %4 {offsets = [0, 0], sizes = [32, 128], strides = [1, 1]} : vector<32x256xf32> to vector<32x128xf32>
    %c0_1 = arith.constant 0 : index
    %c0_2 = arith.constant 0 : index
    %c0_3 = arith.constant 0 : index
    %6 = vector.load %arg3[%c0_1, %c0_2, %c0_3] : memref<3x32x32xf32, #tpu.memory_space<vmem>>, vector<1x32x32xf32>
    %7 = vector.shape_cast %6 : vector<1x32x32xf32> to vector<32x32xf32>
    %cst = arith.constant dense<0.000000e+00> : vector<32x128xf32>
    %8 = tpu.matmul %7, %5, %cst {dimension_numbers = #tpu.dot_dimension_numbers<[1], [0], [0], [1], [0, 0, 1, 1], [], []>} : vector<32x32xf32>, vector<32x128xf32>, vector<32x128xf32> -> vector<32x128xf32>
    %c255_i32 = arith.constant 255 : i32
    %9 = tpu.dynamic_rotate %4 by %c255_i32 dim 1 : vector<32x256xf32>, i32 -> vector<32x256xf32>
    %10 = vector.extract_strided_slice %9 {offsets = [0, 0], sizes = [32, 128], strides = [1, 1]} : vector<32x256xf32> to vector<32x128xf32>
    %c1 = arith.constant 1 : index
    %c0_4 = arith.constant 0 : index
    %c0_5 = arith.constant 0 : index
    %11 = vector.load %arg3[%c1, %c0_4, %c0_5] : memref<3x32x32xf32, #tpu.memory_space<vmem>>, vector<1x32x32xf32>
    %12 = vector.shape_cast %11 : vector<1x32x32xf32> to vector<32x32xf32>
    %cst_6 = arith.constant dense<0.000000e+00> : vector<32x128xf32>
    %13 = tpu.matmul %12, %10, %cst_6 {dimension_numbers = #tpu.dot_dimension_numbers<[1], [0], [0], [1], [0, 0, 1, 1], [], []>} : vector<32x32xf32>, vector<32x128xf32>, vector<32x128xf32> -> vector<32x128xf32>
    %14 = arith.addf %8, %13 : vector<32x128xf32>
    %c254_i32 = arith.constant 254 : i32
    %15 = tpu.dynamic_rotate %4 by %c254_i32 dim 1 : vector<32x256xf32>, i32 -> vector<32x256xf32>
    %16 = vector.extract_strided_slice %15 {offsets = [0, 0], sizes = [32, 128], strides = [1, 1]} : vector<32x256xf32> to vector<32x128xf32>
    %c2 = arith.constant 2 : index
    %c0_7 = arith.constant 0 : index
    %c0_8 = arith.constant 0 : index
    %17 = vector.load %arg3[%c2, %c0_7, %c0_8] : memref<3x32x32xf32, #tpu.memory_space<vmem>>, vector<1x32x32xf32>
    %18 = vector.shape_cast %17 : vector<1x32x32xf32> to vector<32x32xf32>
    %cst_9 = arith.constant dense<0.000000e+00> : vector<32x128xf32>
    %19 = tpu.matmul %18, %16, %cst_9 {dimension_numbers = #tpu.dot_dimension_numbers<[1], [0], [0], [1], [0, 0, 1, 1], [], []>} : vector<32x32xf32>, vector<32x128xf32>, vector<32x128xf32> -> vector<32x128xf32>
    %20 = arith.addf %14, %19 : vector<32x128xf32>
    %c0_10 = arith.constant 0 : index
    %c0_11 = arith.constant 0 : index
    %21 = vector.load %arg4[%c0_10, %c0_11] : memref<32x1xf32, #tpu.memory_space<vmem>>, vector<32x1xf32>
    %22 = vector.broadcast %21 : vector<32x1xf32> to vector<32x128xf32>
    %23 = arith.addf %20, %22 : vector<32x128xf32>
    %cst_12 = arith.constant 0.000000e+00 : f32
    %24 = vector.broadcast %cst_12 : f32 to vector<32x128xf32>
    %25 = arith.maximumf %23, %24 : vector<32x128xf32>
    %cst_13 = arith.constant dense<0.000000e+00> : vector<128xf32>
    %26 = vector.multi_reduction <add>, %25, %cst_13 [0] : vector<32x128xf32> to vector<128xf32>
    %27 = vector.shape_cast %26 : vector<128xf32> to vector<1x128xf32>
    %28 = arith.mulf %25, %25 : vector<32x128xf32>
    %cst_14 = arith.constant dense<0.000000e+00> : vector<128xf32>
    %29 = vector.multi_reduction <add>, %28, %cst_14 [0] : vector<32x128xf32> to vector<128xf32>
    %30 = vector.shape_cast %29 : vector<128xf32> to vector<1x128xf32>
    %cst_15 = arith.constant 3.125000e-02 : f32
    %31 = vector.broadcast %cst_15 : f32 to vector<1x128xf32>
    %32 = arith.mulf %27, %31 : vector<1x128xf32>
    %cst_16 = arith.constant 3.125000e-02 : f32
    %33 = vector.broadcast %cst_16 : f32 to vector<1x128xf32>
    %34 = arith.mulf %30, %33 : vector<1x128xf32>
    %35 = arith.mulf %32, %32 : vector<1x128xf32>
    %36 = arith.subf %34, %35 : vector<1x128xf32>
    %cst_17 = arith.constant 9.99999974E-6 : f32
    %37 = vector.broadcast %cst_17 : f32 to vector<1x128xf32>
    %38 = arith.addf %36, %37 : vector<1x128xf32>
    %39 = math.rsqrt %38 : vector<1x128xf32>
    %40 = vector.broadcast %32 : vector<1x128xf32> to vector<32x128xf32>
    %41 = arith.subf %25, %40 : vector<32x128xf32>
    %42 = vector.broadcast %39 : vector<1x128xf32> to vector<32x128xf32>
    %43 = arith.mulf %41, %42 : vector<32x128xf32>
    %c0_18 = arith.constant 0 : index
    %c0_19 = arith.constant 0 : index
    %44 = vector.load %arg5[%c0_18, %c0_19] : memref<32x1xf32, #tpu.memory_space<vmem>>, vector<32x1xf32>
    %45 = vector.broadcast %44 : vector<32x1xf32> to vector<32x128xf32>
    %46 = arith.mulf %43, %45 : vector<32x128xf32>
    %c0_20 = arith.constant 0 : index
    %c0_21 = arith.constant 0 : index
    %47 = vector.load %arg6[%c0_20, %c0_21] : memref<32x1xf32, #tpu.memory_space<vmem>>, vector<32x1xf32>
    %48 = vector.broadcast %47 : vector<32x1xf32> to vector<32x128xf32>
    %49 = arith.addf %46, %48 : vector<32x128xf32>
    %c0_22 = arith.constant 0 : index
    %c0_23 = arith.constant 0 : index
    %c0_24 = arith.constant 0 : index
    %50 = vector.load %arg7[%c0_22, %c0_23, %c0_24] : memref<1x32x128xf32, #tpu.memory_space<vmem>>, vector<1x32x128xf32>
    %51 = vector.shape_cast %50 : vector<1x32x128xf32> to vector<32x128xf32>
    %52 = vector.shape_cast %49 : vector<32x128xf32> to vector<1x32x128xf32>
    tpu.vector_store %arg7[%c0_22, %c0_23, %c0_24], %52 {strides = array<i32>} : memref<1x32x128xf32, #tpu.memory_space<vmem>>, vector<1x32x128xf32>,
    return
  }
  func.func @transform_0(%arg0: i32, %arg1: i32) -> (i32, i32, i32) {
    %c0_i32 = arith.constant 0 : i32
    %c0_i32_0 = arith.constant 0 : i32
    %c0_i32_1 = arith.constant 0 : i32
    return %arg0, %c0_i32, %c0_i32_0 : i32, i32, i32
  }
  func.func @transform_1(%arg0: i32, %arg1: i32) -> (i32, i32, i32) {
    %c0_i32 = arith.constant 0 : i32
    %c0_i32_0 = arith.constant 0 : i32
    %c0_i32_1 = arith.constant 0 : i32
    %c0_i32_2 = arith.constant 0 : i32
    return %c0_i32, %c0_i32_0, %c0_i32_1 : i32, i32, i32
  }
  func.func @transform_2(%arg0: i32, %arg1: i32) -> (i32, i32) {
    %c0_i32 = arith.constant 0 : i32
    %c0_i32_0 = arith.constant 0 : i32
    %c0_i32_1 = arith.constant 0 : i32
    return %c0_i32, %c0_i32_0 : i32, i32
  }
  func.func @transform_3(%arg0: i32, %arg1: i32) -> (i32, i32) {
    %c0_i32 = arith.constant 0 : i32
    %c0_i32_0 = arith.constant 0 : i32
    %c0_i32_1 = arith.constant 0 : i32
    return %c0_i32, %c0_i32_0 : i32, i32
  }
  func.func @transform_4(%arg0: i32, %arg1: i32) -> (i32, i32) {
    %c0_i32 = arith.constant 0 : i32
    %c0_i32_0 = arith.constant 0 : i32
    %c0_i32_1 = arith.constant 0 : i32
    return %c0_i32, %c0_i32_0 : i32, i32
  }
  func.func @transform_5(%arg0: i32, %arg1: i32) -> (i32, i32, i32) {
    %c0_i32 = arith.constant 0 : i32
    %c0_i32_0 = arith.constant 0 : i32
    return %arg0, %c0_i32, %arg1 : i32, i32, i32
  }
}

</mosaic_0001>

<llo_original>
// kernel: tpu_custom_call.1
$region0: #{tpu_custom_call.1}
  #allocation0 [shape = 'u32[]', space=smem, size = 0x4, offset = 0x4, fixed_abs, tag = 'smem constant byte address 0x4 - core index']
  #allocation1 [shape = 'u32[144,128]{1,0:T(1,128)}', space=vmem, size = 0x12000, scoped, tag = 'internal scratch']
  %s0 = inlined_call_operand.hbm [shape: f32[2,32,256], index: 0, kind: input, shape index: {}]
  %s1 = inlined_call_operand.vmem [shape: f32[3,32,32], index: 1, kind: input, shape index: {}]
  %s2 = inlined_call_operand.vmem [shape: f32[32,1], index: 2, kind: input, shape index: {}]
  %s3 = inlined_call_operand.vmem [shape: f32[32,1], index: 3, kind: input, shape index: {}]
  %s4 = inlined_call_operand.vmem [shape: f32[32,1], index: 4, kind: input, shape index: {}]
  %s5 = inlined_call_operand.hbm [shape: f32[2,32,128], index: 5, kind: output, shape index: {}]
  %s6 = sld [smem:[#allocation0]]
  $region57: #{tpu_custom_call.1} parent=0
    _
  %s8 = ssub.s32 1, %s6
  %s9 = scalar_select 0, %s8, %s6
  $region1: #{tpu_custom_call.1} parent=0
    #allocation2 [shape = 'u8[65536]{0}', space=vmem, size = 0x10000, scoped, tag = 'input window, operand 0']
    #allocation3 [shape = 's32[2]{0}', space=sflag, size = 0x8, scoped, tag = 'scoped memory for tpu_custom_call.1']
    #allocation4 [shape = 's32[2]{0}', space=sflag, size = 0x8, scoped, tag = 'scoped memory for tpu_custom_call.1']
    #allocation5 [shape = 'u8[32768]{0}', space=vmem, size = 0x8000, scoped, tag = 'output window, operand 0']
    %10 = vsyncpa [#allocation3], 0
    %s11 = scalar_lea.sflag [#allocation3], 1
    %12 = vsyncpa %s11, 0
    %13 = vsyncpa [#allocation4], 0
    %s14 = scalar_lea.sflag [#allocation4], 1
    %15 = vsyncpa %s14, 0
    loop: start=0, step=1, limit=4
    $region2: #{tpu_custom_call.1} parent=1 // loop_pre_header
      _
    $region3: #{tpu_custom_call.1} parent=1 // loop_header
      %s17 = sphi 0, %s21
      %p18 = scmp.ge.s32.totalorder %s17, 4
      %s24 = sphi 0, %s36
      %s25 = sphi 0, %s32
      %s26 = sphi 0, %s24
      %s27 = sphi 0, %s25
      %s28 = sphi 0, %s26
      %s29 = sphi 0, %s27
      %s39 = sphi 0, %s41
      %s42 = sphi 0, %s39
      %s43 = sphi 0, %s42
      %s59 = sphi 0, %s43
      %s63 = sphi 0, %s63
      %s65 = sphi 0, %s63
      %s66 = sphi 0, %s65
      %s80 = sphi 0, %s66
      %s84 = sphi 0, %s84
      %s86 = sphi 0, %s84
      %s87 = sphi 0, %s86
      %s101 = sphi 0, %s87
      %s105 = sphi 0, %s105
      %s107 = sphi 0, %s105
      %s108 = sphi 0, %s107
      %s122 = sphi 0, %s108
      %s126 = sphi 0, %s126
      %s128 = sphi 0, %s126
      %s129 = sphi 0, %s128
      %s143 = sphi 0, %s129
      %s151 = sphi 0, %s153
      %s154 = sphi 0, %s151
      %s155 = sphi 0, %s154
      %s171 = sphi 0, %s155
    $region4: #{tpu_custom_call.1} parent=1 // loop_header_branch
      %20 = sbr.rel (%p18) target = $region8
    $region5: #{tpu_custom_call.1} parent=1 // loop_body
      %s22 = ssub.s32 %s17, 1
      %s23 = ssub.s32 %s17, 2
      %s30 = sadd.s32 1, %s25
      %p31 = scmp.ge.s32.totalorder %s30, 1
      %s32 = scalar_select %p31, 0, %s30
      %s33 = sadd.s32 1, %s24
      %s34 = scalar_select %p31, %s33, %s24
      %p35 = scmp.ge.s32.totalorder %s34, 2
      %s36 = scalar_select %p35, 0, %s34
      %s37 = ssub.s32 %s24, %s36
      %p38 = scmp.eq.s32.totalorder %s37, 0
      %s40 = sadd.s32 %s39, 1
      %s41 = scalar_select %p38, %s39, %s40
      %p44 = pneg %p38
      %p45 = scmp.eq.s32.totalorder %s17, 1
      %p46 = por %p44, %p45
      %p47 = scmp.ne.s32.totalorder %s39, %s42
      %p48 = scmp.eq.s32.totalorder %s17, 0
      %p49 = por %p47, %p48
      %p50 = scmp.ne.s32.totalorder %s39, %s42
      %p51 = scmp.eq.s32.totalorder %s22, 1
      %p52 = por %p50, %p51
      %p53 = scmp.ne.s32.totalorder %s42, %s43
      %p54 = scmp.eq.s32.totalorder %s22, 0
      %p55 = por %p53, %p54
      %p56 = scmp.ne.s32.totalorder %s42, %s43
      %p57 = scmp.eq.s32.totalorder %s23, 1
      %p58 = por %p56, %p57
      %p60 = scmp.ne.s32.totalorder %s43, %s59
      %p61 = scmp.eq.s32.totalorder %s23, 0
      %p62 = por %p60, %p61
      %s64 = sadd.s32 %s63, 1
      %p67 = scmp.eq.s32.totalorder %s17, 1
      %p68 = scmp.ne.s32.totalorder %s63, %s65
      %p69 = scmp.eq.s32.totalorder %s17, 0
      %p70 = por %p68, %p69
      %p71 = scmp.ne.s32.totalorder %s63, %s65
      %p72 = scmp.eq.s32.totalorder %s22, 1
      %p73 = por %p71, %p72
      %p74 = scmp.ne.s32.totalorder %s65, %s66
      %p75 = scmp.eq.s32.totalorder %s22, 0
      %p76 = por %p74, %p75
      %p77 = scmp.ne.s32.totalorder %s65, %s66
      %p78 = scmp.eq.s32.totalorder %s23, 1
      %p79 = por %p77, %p78
      %p81 = scmp.ne.s32.totalorder %s66, %s80
      %p82 = scmp.eq.s32.totalorder %s23, 0
      %p83 = por %p81, %p82
      %s85 = sadd.s32 %s84, 1
      %p88 = scmp.eq.s32.totalorder %s17, 1
      %p89 = scmp.ne.s32.totalorder %s84, %s86
      %p90 = scmp.eq.s32.totalorder %s17, 0
      %p91 = por %p89, %p90
      %p92 = scmp.ne.s32.totalorder %s84, %s86
      %p93 = scmp.eq.s32.totalorder %s22, 1
      %p94 = por %p92, %p93
      %p95 = scmp.ne.s32.totalorder %s86, %s87
      %p96 = scmp.eq.s32.totalorder %s22, 0
      %p97 = por %p95, %p96
      %p98 = scmp.ne.s32.totalorder %s86, %s87
      %p99 = scmp.eq.s32.totalorder %s23, 1
      %p100 = por %p98, %p99
      %p102 = scmp.ne.s32.totalorder %s87, %s101
      %p103 = scmp.eq.s32.totalorder %s23, 0
      %p104 = por %p102, %p103
      %s106 = sadd.s32 %s105, 1
      %p109 = scmp.eq.s32.totalorder %s17, 1
      %p110 = scmp.ne.s32.totalorder %s105, %s107
      %p111 = scmp.eq.s32.totalorder %s17, 0
      %p112 = por %p110, %p111
      %p113 = scmp.ne.s32.totalorder %s105, %s107
      %p114 = scmp.eq.s32.totalorder %s22, 1
      %p115 = por %p113, %p114
      %p116 = scmp.ne.s32.totalorder %s107, %s108
      %p117 = scmp.eq.s32.totalorder %s22, 0
      %p118 = por %p116, %p117
      %p119 = scmp.ne.s32.totalorder %s107, %s108
      %p120 = scmp.eq.s32.totalorder %s23, 1
      %p121 = por %p119, %p120
      %p123 = scmp.ne.s32.totalorder %s108, %s122
      %p124 = scmp.eq.s32.totalorder %s23, 0
      %p125 = por %p123, %p124
      %s127 = sadd.s32 %s126, 1
      %p130 = scmp.eq.s32.totalorder %s17, 1
      %p131 = scmp.ne.s32.totalorder %s126, %s128
      %p132 = scmp.eq.s32.totalorder %s17, 0
      %p133 = por %p131, %p132
      %p134 = scmp.ne.s32.totalorder %s126, %s128
      %p135 = scmp.eq.s32.totalorder %s22, 1
      %p136 = por %p134, %p135
      %p137 = scmp.ne.s32.totalorder %s128, %s129
      %p138 = scmp.eq.s32.totalorder %s22, 0
      %p139 = por %p137, %p138
      %p140 = scmp.ne.s32.totalorder %s128, %s129
      %p141 = scmp.eq.s32.totalorder %s23, 1
      %p142 = por %p140, %p141
      %p144 = scmp.ne.s32.totalorder %s129, %s143
      %p145 = scmp.eq.s32.totalorder %s23, 0
      %p146 = por %p144, %p145
      %s147 = ssub.s32 %s24, %s36
      %s148 = ssub.s32 %s25, %s32
      %s149 = sor.u32 %s147, %s148
      %p150 = scmp.eq.s32.totalorder %s149, 0
      %s152 = sadd.s32 %s151, 1
      %s153 = scalar_select %p150, %s151, %s152
      %p156 = pneg %p150
      %p157 = scmp.eq.s32.totalorder %s17, 1
      %p158 = por %p156, %p157
      %p159 = scmp.ne.s32.totalorder %s151, %s154
      %p160 = scmp.eq.s32.totalorder %s17, 0
      %p161 = por %p159, %p160
      %p162 = scmp.ne.s32.totalorder %s151, %s154
      %p163 = scmp.eq.s32.totalorder %s22, 1
      %p164 = por %p162, %p163
      %p165 = scmp.ne.s32.totalorder %s154, %s155
      %p166 = scmp.eq.s32.totalorder %s22, 0
      %p167 = por %p165, %p166
      %p168 = scmp.ne.s32.totalorder %s154, %s155
      %p169 = scmp.eq.s32.totalorder %s23, 1
      %p170 = por %p168, %p169
      %p172 = scmp.ne.s32.totalorder %s155, %s171
      %p173 = scmp.eq.s32.totalorder %s23, 0
      %p174 = por %p172, %p173
      %p175 = scmp.le.s32.totalorder 1, %s17
      %p176 = scmp.lt.s32.totalorder %s17, 3
      %p177 = pnand %p175, %p176
      %p178 = pneg %p177
      // Predicated region
      $region9: #{tpu_custom_call.1} parent=5 // pred_check
        _
      $region10: #{tpu_custom_call.1} parent=5 // pred_check_branch
        %180 = sbr.rel (%p177) target = $region12
      $region11: #{tpu_custom_call.1} parent=5 // pred_region
        %s181 = ssub.s32 %s17, 1
        // Predicated region
        $region13: #{tpu_custom_call.1} parent=11 // pred_check
          %p182 = pneg %p76
        $region14: #{tpu_custom_call.1} parent=11 // pred_check_branch
          %184 = sbr.rel (%p182) target = $region16
        $region15: #{tpu_custom_call.1} parent=11 // pred_region
          _
        $region16: #{tpu_custom_call.1} parent=11 // pred_fallthru
          _
        // Predicated region
        $region17: #{tpu_custom_call.1} parent=11 // pred_check
          %p185 = pneg %p97
        $region18: #{tpu_custom_call.1} parent=11 // pred_check_branch
          %187 = sbr.rel (%p185) target = $region20
        $region19: #{tpu_custom_call.1} parent=11 // pred_region
          _
        $region20: #{tpu_custom_call.1} parent=11 // pred_fallthru
          _
        // Predicated region
        $region21: #{tpu_custom_call.1} parent=11 // pred_check
          %p188 = pneg %p118
        $region22: #{tpu_custom_call.1} parent=11 // pred_check_branch
          %190 = sbr.rel (%p188) target = $region24
        $region23: #{tpu_custom_call.1} parent=11 // pred_region
          _
        $region24: #{tpu_custom_call.1} parent=11 // pred_fallthru
          _
        // Predicated region
        $region25: #{tpu_custom_call.1} parent=11 // pred_check
          %p191 = pneg %p139
        $region26: #{tpu_custom_call.1} parent=11 // pred_check_branch
          %193 = sbr.rel (%p191) target = $region28
        $region27: #{tpu_custom_call.1} parent=11 // pred_region
          _
        $region28: #{tpu_custom_call.1} parent=11 // pred_fallthru
          _
      $region12: #{tpu_custom_call.1} parent=5 // pred_fallthru
        _
      %p194 = scmp.lt.s32.totalorder %s17, 2
      // Predicated region
      $region29: #{tpu_custom_call.1} parent=5 // pred_check
        %p195 = pneg %p194
      $region30: #{tpu_custom_call.1} parent=5 // pred_check_branch
        %197 = sbr.rel (%p195) target = $region32
      $region31: #{tpu_custom_call.1} parent=5 // pred_region
        // Predicated region
        $region33: #{tpu_custom_call.1} parent=31 // pred_check
          %p198 = pneg %p49
        $region34: #{tpu_custom_call.1} parent=31 // pred_check_branch
          %200 = sbr.rel (%p198) target = $region36
        $region35: #{tpu_custom_call.1} parent=31 // pred_region
          %s201 = sand.u32 %s39, 1
          %s202 = scalar_lea.sflag [#allocation3], %s201
          %s203 = sand.u32 %s39, 1
          %s204 = smul.addr %s203, 64
          %s205 = scalar_lea.vmem [#allocation2], %s204
          %s207 = ssub.s32 1024, 1024
          %208 = vsyncadd %s202, %s207
          %s209 = smul.addr %s24, 8
          %s210 = smul.addr %s209, 128
          %s211 = scalar_lea.hbm %s0, %s210
          %s212 = sshll.u32 %s205, 4
          %s213 = int_to_ptr.vmem [resolvable:$true] %s212
          %218 = dma.hbm_to_vmem [thread:$0]  %s211, 1024, %s213, %s202, 256, 256, 16
        $region36: #{tpu_custom_call.1} parent=31 // pred_fallthru
          _
      $region32: #{tpu_custom_call.1} parent=5 // pred_fallthru
        _
      %p219 = scmp.le.s32.totalorder 1, %s17
      %p220 = scmp.lt.s32.totalorder %s17, 3
      %p221 = pnand %p219, %p220
      %p222 = pneg %p221
      // Predicated region
      $region37: #{tpu_custom_call.1} parent=5 // pred_check
        _
      $region38: #{tpu_custom_call.1} parent=5 // pred_check_branch
        %224 = sbr.rel (%p221) target = $region40
      $region39: #{tpu_custom_call.1} parent=5 // pred_region
        %s225 = ssub.s32 %s17, 1
        %s226 = sand.u32 %s42, 1
        %s227 = scalar_lea.sflag [#allocation3], %s226
        %s228 = sand.u32 %s42, 1
        %s229 = smul.addr %s228, 64
        %s230 = scalar_lea.vmem [#allocation2], %s229
        // Predicated region
        $region41: #{tpu_custom_call.1} parent=39 // pred_check
          %p231 = pneg %p55
        $region42: #{tpu_custom_call.1} parent=39 // pred_check_branch
          %233 = sbr.rel (%p231) target = $region44
        $region43: #{tpu_custom_call.1} parent=39 // pred_region
          %234 = dma.done %s227, 1024
        $region44: #{tpu_custom_call.1} parent=39 // pred_fallthru
          _
        %s235 = sand.u32 %s42, 1
        %s236 = scalar_lea.sflag [#allocation3], %s235
        %s237 = sand.u32 %s42, 1
        %s238 = smul.addr %s237, 64
        %s239 = scalar_lea.vmem [#allocation2], %s238
        %p240 = pneg %p55
        %p241 = pneg %p52
        %p242 = pneg %p76
        %p243 = pneg %p73
        %p244 = pneg %p97
        %p245 = pneg %p94
        %p246 = pneg %p118
        %p247 = pneg %p115
        %p248 = pneg %p139
        %p249 = pneg %p136
        %p250 = pneg %p167
        %p251 = pneg %p164
        %s252 = sand.u32 %s154, 1
        %s253 = scalar_lea.sflag [#allocation4], %s252
        %s254 = sand.u32 %s154, 1
        %s255 = smul.addr %s254, 32
        %s256 = scalar_lea.vmem [#allocation5], %s255
        %s257 = smul.u32 %s27, 128
        %s258 = sshra.s32 %s257, 7
        %s259 = sand.u32 %s257, 127
        %s260 = smul.addr %s258, 8
        %s261 = scalar_lea.vmem %s230, %s260 [#allocation2]
        %v262 = vld [vmem:[%s261] sm:$0xff]
        %v263 = vld [vmem:[%s261 + $0x8] sm:$0xff]
        %v264 = vld [vmem:[%s261 + $0x10] sm:$0xff]
        %v265 = vld [vmem:[%s261 + $0x18] sm:$0xff]
        %v266 = vld [vmem:[%s261 + $0x20] sm:$0xff]
        %v267 = vld [vmem:[%s261 + $0x28] sm:$0xff]
        %v268 = vld [vmem:[%s261 + $0x30] sm:$0xff]
        %v269 = vld [vmem:[%s261 + $0x38] sm:$0xff]
        %v270 = vld [vmem:[%s1] sm:$0xff]
        %v271 = vld [vmem:[%s1 + $0x8] sm:$0xff]
        %v272 = vld [vmem:[%s1 + $0x10] sm:$0xff]
        %v273 = vld [vmem:[%s1 + $0x18] sm:$0xff]
        %274 = vrot.lane.b32.xlu0 %v262, 127
        %v275 = vpop.permute.xlu0 %274
        %276 = vrot.lane.b32.xlu0 %v264, 127
        %v277 = vpop.permute.xlu0 %276
        %278 = vrot.lane.b32.xlu0 %v266, 127
        %v279 = vpop.permute.xlu0 %278
        %280 = vrot.lane.b32.xlu0 %v268, 127
        %v281 = vpop.permute.xlu0 %280
        %282 = vrot.lane.b32.xlu0 %v263, 127
        %v283 = vpop.permute.xlu0 %282
        %284 = vrot.lane.b32.xlu0 %v265, 127
        %v285 = vpop.permute.xlu0 %284
        %286 = vrot.lane.b32.xlu0 %v267, 127
        %v287 = vpop.permute.xlu0 %286
        %288 = vrot.lane.b32.xlu0 %v269, 127
        %v289 = vpop.permute.xlu0 %288
        %v290 = vlaneseq
        %v291 = vand.u32 %v290, 127
        %vm292 = vcmp.lt.s32.totalorder %v291, 127
        %v293 = vsel %vm292, %v275, %v283
        %v294 = vsel %vm292, %v277, %v285
        %v295 = vsel %vm292, %v279, %v287
        %v296 = vsel %vm292, %v281, %v289
        %s297 = scalar_lea.vmem %s1, 32
        %v298 = vld [vmem:[%s297] sm:$0xff]
        %v299 = vld [vmem:[%s297 + $0x8] sm:$0xff]
        %v300 = vld [vmem:[%s297 + $0x10] sm:$0xff]
        %v301 = vld [vmem:[%s297 + $0x18] sm:$0xff]
        %vm302 = vcmask 261120
        %v304 = vsel %vm302, %v298, 0
        %v307 = vsel %vm302, %v299, 0
        %v310 = vsel %vm302, %v300, 0
        %v313 = vsel %vm302, %v301, 0
        %315 = vmatprep.subr.mxu0 0.0
        %316 = vmatpush1.msra.mxu0 %v293
        %317 = vmatprep.subr.mxu0 0.0
        %318 = vmatpush1.msra.mxu0 %v294
        %319 = vmatprep.subr.mxu0 0.0
        %320 = vmatpush1.msra.mxu0 %v295
        %321 = vmatprep.subr.mxu0 0.0
        %322 = vmatpush1.msra.mxu0 %v296
        %323 = vmatprep.subr.mxu0 0.0
        %324 = vmatpush1.msra.mxu0 0.0
        %325 = vmatprep.subr.mxu0 0.0
        %326 = vmatpush1.msra.mxu0 0.0
        %327 = vmatprep.subr.mxu0 0.0
        %328 = vmatpush1.msra.mxu0 0.0
        %329 = vmatprep.subr.mxu0 0.0
        %330 = vmatpush1.msra.mxu0 0.0
        %331 = vmatprep.subr.mxu0 0.0
        %332 = vmatpush1.msra.mxu0 0.0
        %333 = vmatprep.subr.mxu0 0.0
        %334 = vmatpush1.msra.mxu0 0.0
        %335 = vmatprep.subr.mxu0 0.0
        %336 = vmatpush1.msra.mxu0 0.0
        %337 = vmatprep.subr.mxu0 0.0
        %338 = vmatpush1.msra.mxu0 0.0
        %339 = vmatprep.subr.mxu0 0.0
        %340 = vmatpush1.msra.mxu0 0.0
        %341 = vmatprep.subr.mxu0 0.0
        %342 = vmatpush1.msra.mxu0 0.0
        %343 = vmatprep.subr.mxu0 0.0
        %344 = vmatpush1.msra.mxu0 0.0
        %345 = vmatprep.subr.mxu0 0.0
        %346 = vmatpush1.msra.mxu0 0.0
        %347 = vmatprep.subr.mxu0 0.0
        %348 = vmatpush1.msra.mxu0 0.0
        %349 = vmatprep.subr.mxu0 0.0
        %350 = vmatpush1.msra.mxu0 0.0
        %351 = vmatprep.subr.mxu0 0.0
        %352 = vmatpush1.msra.mxu0 0.0
        %353 = vmatprep.subr.mxu0 0.0
        %354 = vmatpush1.msra.mxu0 0.0
        %355 = vmatprep.subr.mxu0 0.0
        %356 = vmatpush1.msra.mxu0 0.0
        %357 = vmatprep.subr.mxu0 0.0
        %358 = vmatpush1.msra.mxu0 0.0
        %359 = vmatprep.subr.mxu0 0.0
        %360 = vmatpush1.msra.mxu0 0.0
        %361 = vmatprep.subr.mxu0 0.0
        %362 = vmatpush1.msra.mxu0 0.0
        %363 = vmatprep.subr.mxu0 0.0
        %364 = vmatpush1.msra.mxu0 0.0
        %365 = vmatprep.subr.mxu0 0.0
        %366 = vmatpush1.msra.mxu0 0.0
        %367 = vmatprep.subr.mxu0 0.0
        %368 = vmatpush1.msra.mxu0 0.0
        %369 = vmatprep.subr.mxu0 0.0
        %370 = vmatpush1.msra.mxu0 0.0
        %371 = vmatprep.subr.mxu0 0.0
        %372 = vmatpush1.msra.mxu0 0.0
        %373 = vmatprep.subr.mxu0 0.0
        %374 = vmatpush1.msra.mxu0 0.0
        %375 = vmatprep.subr.mxu0 0.0
        %376 = vmatpush1.msra.mxu0 0.0
        %377 = vmatprep.subr.mxu0 0.0
        %378 = vmatpush1.msra.mxu0 0.0
        %379 = vmatprep.mubr.f32.mxu0 0.0
        %380 = vmatmul.mubr.f32.gmra.mrb[0].mxu0 %v304
        %v381 = vpop.f32.mrb[0].mxu0
        %v382 = vadd.f32 0.0, %v381
        %v383 = vpop.f32.mrb[0].mxu0
        %384 = vmatprep.mubr.f32.mxu0 0.0
        %385 = vmatmul.mubr.f32.gmra.mrb[0].mxu0 %v307
        %v386 = vpop.f32.mrb[0].mxu0
        %v387 = vadd.f32 0.0, %v386
        %v388 = vpop.f32.mrb[0].mxu0
        %389 = vmatprep.mubr.f32.mxu0 0.0
        %390 = vmatmul.mubr.f32.gmra.mrb[0].mxu0 %v310
        %v391 = vpop.f32.mrb[0].mxu0
        %v392 = vadd.f32 0.0, %v391
        %v393 = vpop.f32.mrb[0].mxu0
        %394 = vmatprep.mubr.f32.mxu0 0.0
        %395 = vmatmul.mubr.f32.gmra.mrb[0].mxu0 %v313
        %v396 = vpop.f32.mrb[0].mxu0
        %v397 = vadd.f32 0.0, %v396
        %v398 = vpop.f32.mrb[0].mxu0
        %399 = vdwg.mxu0
        %v401 = vsel %vm302, %v270, 0
        %v404 = vsel %vm302, %v271, 0
        %v407 = vsel %vm302, %v272, 0
        %v410 = vsel %vm302, %v273, 0
        %412 = vmatprep.subr.mxu0 0.0
        %413 = vmatpush1.msra.mxu0 %v262
        %414 = vmatprep.subr.mxu0 0.0
        %415 = vmatpush1.msra.mxu0 %v264
        %416 = vmatprep.subr.mxu0 0.0
        %417 = vmatpush1.msra.mxu0 %v266
        %418 = vmatprep.subr.mxu0 0.0
        %419 = vmatpush1.msra.mxu0 %v268
        %420 = vmatprep.subr.mxu0 0.0
        %421 = vmatpush1.msra.mxu0 0.0
        %422 = vmatprep.subr.mxu0 0.0
        %423 = vmatpush1.msra.mxu0 0.0
        %424 = vmatprep.subr.mxu0 0.0
        %425 = vmatpush1.msra.mxu0 0.0
        %426 = vmatprep.subr.mxu0 0.0
        %427 = vmatpush1.msra.mxu0 0.0
        %428 = vmatprep.subr.mxu0 0.0
        %429 = vmatpush1.msra.mxu0 0.0
        %430 = vmatprep.subr.mxu0 0.0
        %431 = vmatpush1.msra.mxu0 0.0
        %432 = vmatprep.subr.mxu0 0.0
        %433 = vmatpush1.msra.mxu0 0.0
        %434 = vmatprep.subr.mxu0 0.0
        %435 = vmatpush1.msra.mxu0 0.0
        %436 = vmatprep.subr.mxu0 0.0
        %437 = vmatpush1.msra.mxu0 0.0
        %438 = vmatprep.subr.mxu0 0.0
        %439 = vmatpush1.msra.mxu0 0.0
        %440 = vmatprep.subr.mxu0 0.0
        %441 = vmatpush1.msra.mxu0 0.0
        %442 = vmatprep.subr.mxu0 0.0
        %443 = vmatpush1.msra.mxu0 0.0
        %444 = vmatprep.subr.mxu0 0.0
        %445 = vmatpush1.msra.mxu0 0.0
        %446 = vmatprep.subr.mxu0 0.0
        %447 = vmatpush1.msra.mxu0 0.0
        %448 = vmatprep.subr.mxu0 0.0
        %449 = vmatpush1.msra.mxu0 0.0
        %450 = vmatprep.subr.mxu0 0.0
        %451 = vmatpush1.msra.mxu0 0.0
        %452 = vmatprep.subr.mxu0 0.0
        %453 = vmatpush1.msra.mxu0 0.0
        %454 = vmatprep.subr.mxu0 0.0
        %455 = vmatpush1.msra.mxu0 0.0
        %456 = vmatprep.subr.mxu0 0.0
        %457 = vmatpush1.msra.mxu0 0.0
        %458 = vmatprep.subr.mxu0 0.0
        %459 = vmatpush1.msra.mxu0 0.0
        %460 = vmatprep.subr.mxu0 0.0
        %461 = vmatpush1.msra.mxu0 0.0
        %462 = vmatprep.subr.mxu0 0.0
        %463 = vmatpush1.msra.mxu0 0.0
        %464 = vmatprep.subr.mxu0 0.0
        %465 = vmatpush1.msra.mxu0 0.0
        %466 = vmatprep.subr.mxu0 0.0
        %467 = vmatpush1.msra.mxu0 0.0
        %468 = vmatprep.subr.mxu0 0.0
        %469 = vmatpush1.msra.mxu0 0.0
        %470 = vmatprep.subr.mxu0 0.0
        %471 = vmatpush1.msra.mxu0 0.0
        %472 = vmatprep.subr.mxu0 0.0
        %473 = vmatpush1.msra.mxu0 0.0
        %474 = vmatprep.subr.mxu0 0.0
        %475 = vmatpush1.msra.mxu0 0.0
        %476 = vmatprep.mubr.f32.mxu0 0.0
        %477 = vmatmul.mubr.f32.gmra.mrb[0].mxu0 %v401
        %v478 = vpop.f32.mrb[0].mxu0
        %v479 = vadd.f32 %v382, %v478
        %v480 = vpop.f32.mrb[0].mxu0
        %481 = vmatprep.mubr.f32.mxu0 0.0
        %482 = vmatmul.mubr.f32.gmra.mrb[0].mxu0 %v404
        %v483 = vpop.f32.mrb[0].mxu0
        %v484 = vadd.f32 %v387, %v483
        %v485 = vpop.f32.mrb[0].mxu0
        %486 = vmatprep.mubr.f32.mxu0 0.0
        %487 = vmatmul.mubr.f32.gmra.mrb[0].mxu0 %v407
        %v488 = vpop.f32.mrb[0].mxu0
        %v489 = vadd.f32 %v392, %v488
        %v490 = vpop.f32.mrb[0].mxu0
        %491 = vmatprep.mubr.f32.mxu0 0.0
        %492 = vmatmul.mubr.f32.gmra.mrb[0].mxu0 %v410
        %v493 = vpop.f32.mrb[0].mxu0
        %v494 = vadd.f32 %v397, %v493
        %v495 = vpop.f32.mrb[0].mxu0
        %496 = vdwg.mxu0
        %497 = vrot.lane.b32.xlu0 %v262, 126
        %v498 = vpop.permute.xlu0 %497
        %499 = vrot.lane.b32.xlu0 %v264, 126
        %v500 = vpop.permute.xlu0 %499
        %501 = vrot.lane.b32.xlu0 %v266, 126
        %v502 = vpop.permute.xlu0 %501
        %503 = vrot.lane.b32.xlu0 %v268, 126
        %v504 = vpop.permute.xlu0 %503
        %505 = vrot.lane.b32.xlu0 %v263, 126
        %v506 = vpop.permute.xlu0 %505
        %507 = vrot.lane.b32.xlu0 %v265, 126
        %v508 = vpop.permute.xlu0 %507
        %509 = vrot.lane.b32.xlu0 %v267, 126
        %v510 = vpop.permute.xlu0 %509
        %511 = vrot.lane.b32.xlu0 %v269, 126
        %v512 = vpop.permute.xlu0 %511
        %vm513 = vcmp.lt.s32.totalorder %v291, 126
        %v514 = vsel %vm513, %v498, %v506
        %v515 = vsel %vm513, %v500, %v508
        %v516 = vsel %vm513, %v502, %v510
        %v517 = vsel %vm513, %v504, %v512
        %s518 = scalar_lea.vmem %s1, 64
        %v519 = vld [vmem:[%s518] sm:$0xff]
        %v520 = vld [vmem:[%s518 + $0x8] sm:$0xff]
        %v521 = vld [vmem:[%s518 + $0x10] sm:$0xff]
        %v522 = vld [vmem:[%s518 + $0x18] sm:$0xff]
        %v524 = vsel %vm302, %v519, 0
        %v527 = vsel %vm302, %v520, 0
        %v530 = vsel %vm302, %v521, 0
        %v533 = vsel %vm302, %v522, 0
        %535 = vmatprep.subr.mxu0 0.0
        %536 = vmatpush1.msra.mxu0 %v514
        %537 = vmatprep.subr.mxu0 0.0
        %538 = vmatpush1.msra.mxu0 %v515
        %539 = vmatprep.subr.mxu0 0.0
        %540 = vmatpush1.msra.mxu0 %v516
        %541 = vmatprep.subr.mxu0 0.0
        %542 = vmatpush1.msra.mxu0 %v517
        %543 = vmatprep.subr.mxu0 0.0
        %544 = vmatpush1.msra.mxu0 0.0
        %545 = vmatprep.subr.mxu0 0.0
        %546 = vmatpush1.msra.mxu0 0.0
        %547 = vmatprep.subr.mxu0 0.0
        %548 = vmatpush1.msra.mxu0 0.0
        %549 = vmatprep.subr.mxu0 0.0
        %550 = vmatpush1.msra.mxu0 0.0
        %551 = vmatprep.subr.mxu0 0.0
        %552 = vmatpush1.msra.mxu0 0.0
        %553 = vmatprep.subr.mxu0 0.0
        %554 = vmatpush1.msra.mxu0 0.0
        %555 = vmatprep.subr.mxu0 0.0
        %556 = vmatpush1.msra.mxu0 0.0
        %557 = vmatprep.subr.mxu0 0.0
        %558 = vmatpush1.msra.mxu0 0.0
        %559 = vmatprep.subr.mxu0 0.0
        %560 = vmatpush1.msra.mxu0 0.0
        %561 = vmatprep.subr.mxu0 0.0
        %562 = vmatpush1.msra.mxu0 0.0
        %563 = vmatprep.subr.mxu0 0.0
        %564 = vmatpush1.msra.mxu0 0.0
        %565 = vmatprep.subr.mxu0 0.0
        %566 = vmatpush1.msra.mxu0 0.0
        %567 = vmatprep.subr.mxu0 0.0
        %568 = vmatpush1.msra.mxu0 0.0
        %569 = vmatprep.subr.mxu0 0.0
        %570 = vmatpush1.msra.mxu0 0.0
        %571 = vmatprep.subr.mxu0 0.0
        %572 = vmatpush1.msra.mxu0 0.0
        %573 = vmatprep.subr.mxu0 0.0
        %574 = vmatpush1.msra.mxu0 0.0
        %575 = vmatprep.subr.mxu0 0.0
        %576 = vmatpush1.msra.mxu0 0.0
        %577 = vmatprep.subr.mxu0 0.0
        %578 = vmatpush1.msra.mxu0 0.0
        %579 = vmatprep.subr.mxu0 0.0
        %580 = vmatpush1.msra.mxu0 0.0
        %581 = vmatprep.subr.mxu0 0.0
        %582 = vmatpush1.msra.mxu0 0.0
        %583 = vmatprep.subr.mxu0 0.0
        %584 = vmatpush1.msra.mxu0 0.0
        %585 = vmatprep.subr.mxu0 0.0
        %586 = vmatpush1.msra.mxu0 0.0
        %587 = vmatprep.subr.mxu0 0.0
        %588 = vmatpush1.msra.mxu0 0.0
        %589 = vmatprep.subr.mxu0 0.0
        %590 = vmatpush1.msra.mxu0 0.0
        %591 = vmatprep.subr.mxu0 0.0
        %592 = vmatpush1.msra.mxu0 0.0
        %593 = vmatprep.subr.mxu0 0.0
        %594 = vmatpush1.msra.mxu0 0.0
        %595 = vmatprep.subr.mxu0 0.0
        %596 = vmatpush1.msra.mxu0 0.0
        %597 = vmatprep.subr.mxu0 0.0
        %598 = vmatpush1.msra.mxu0 0.0
        %599 = vmatprep.mubr.f32.mxu0 0.0
        %600 = vmatmul.mubr.f32.gmra.mrb[0].mxu0 %v524
        %v601 = vpop.f32.mrb[0].mxu0
        %v602 = vadd.f32 0.0, %v601
        %v603 = vpop.f32.mrb[0].mxu0
        %604 = vmatprep.mubr.f32.mxu0 0.0
        %605 = vmatmul.mubr.f32.gmra.mrb[0].mxu0 %v527
        %v606 = vpop.f32.mrb[0].mxu0
        %v607 = vadd.f32 0.0, %v606
        %v608 = vpop.f32.mrb[0].mxu0
        %609 = vmatprep.mubr.f32.mxu0 0.0
        %610 = vmatmul.mubr.f32.gmra.mrb[0].mxu0 %v530
        %v611 = vpop.f32.mrb[0].mxu0
        %v612 = vadd.f32 0.0, %v611
        %v613 = vpop.f32.mrb[0].mxu0
        %614 = vmatprep.mubr.f32.mxu0 0.0
        %615 = vmatmul.mubr.f32.gmra.mrb[0].mxu0 %v533
        %v616 = vpop.f32.mrb[0].mxu0
        %v617 = vadd.f32 0.0, %v616
        %v618 = vpop.f32.mrb[0].mxu0
        %619 = vdwg.mxu0
        %v620 = vadd.f32 %v479, %v602
        %v621 = vadd.f32 %v484, %v607
        %v622 = vadd.f32 %v489, %v612
        %v623 = vadd.f32 %v494, %v617
        %v624 = vld [vmem:[%s2] sm:$0xff]
        %v625 = vld [vmem:[%s2 + $0x8] sm:$0xff]
        %v626 = vld [vmem:[%s2 + $0x10] sm:$0xff]
        %v627 = vld [vmem:[%s2 + $0x18] sm:$0xff]
        %629 = vset.pattern.permute.xlu0 0
        %630 = vperm.xlu0 %629, %v624
        %v631 = vpop.permute.xlu0 %630
        %634 = vset.pattern.permute.xlu0 0
        %635 = vperm.xlu0 %634, %v625
        %v636 = vpop.permute.xlu0 %635
        %639 = vset.pattern.permute.xlu0 0
        %640 = vperm.xlu0 %639, %v626
        %v641 = vpop.permute.xlu0 %640
        %644 = vset.pattern.permute.xlu0 0
        %645 = vperm.xlu0 %644, %v627
        %v646 = vpop.permute.xlu0 %645
        %v648 = vadd.f32 %v620, %v631
        %v649 = vadd.f32 %v621, %v636
        %v650 = vadd.f32 %v622, %v641
        %v651 = vadd.f32 %v623, %v646
        %v652 = vmax.f32 %v648, 0.0
        %v653 = vmax.f32 %v649, 0.0
        %v654 = vmax.f32 %v650, 0.0
        %v655 = vmax.f32 %v651, 0.0
        %v656 = vadd.f32 %v652, %v653
        %v657 = vadd.f32 %v656, %v654
        %v658 = vadd.f32 %v657, %v655
        %v659 = vrot.slane %v658, 4
        %v660 = vadd.f32 %v658, %v659
        %v661 = vrot.slane %v660, 2
        %v662 = vadd.f32 %v660, %v661
        %v663 = vrot.slane %v662, 1
        %v664 = vadd.f32 %v662, %v663
        %v665 = vmul.f32 %v652, %v652
        %v666 = vmul.f32 %v653, %v653
        %v667 = vmul.f32 %v654, %v654
        %v668 = vmul.f32 %v655, %v655
        %v669 = vadd.f32 %v665, %v666
        %v670 = vadd.f32 %v669, %v667
        %v671 = vadd.f32 %v670, %v668
        %v672 = vrot.slane %v671, 4
        %v673 = vadd.f32 %v671, %v672
        %v674 = vrot.slane %v673, 2
        %v675 = vadd.f32 %v673, %v674
        %v676 = vrot.slane %v675, 1
        %v677 = vadd.f32 %v675, %v676
        %v678 = vmul.f32 %v664, 0.03125
        %v679 = vmul.f32 %v677, 0.03125
        %v680 = vmul.f32 %v678, %v678
        %v681 = vsub.f32 %v679, %v680
        %v682 = vadd.f32 %v681, 1e-05
        %v683 = vrsqrt.pop %v682
        %v684 = vsub.f32 %v652, %v678
        %v685 = vsub.f32 %v653, %v678
        %v686 = vsub.f32 %v654, %v678
        %v687 = vsub.f32 %v655, %v678
        %v688 = vmul.f32 %v684, %v683
        %v689 = vmul.f32 %v685, %v683
        %v690 = vmul.f32 %v686, %v683
        %v691 = vmul.f32 %v687, %v683
        %v692 = vld [vmem:[%s3] sm:$0xff]
        %v693 = vld [vmem:[%s3 + $0x8] sm:$0xff]
        %v694 = vld [vmem:[%s3 + $0x10] sm:$0xff]
        %v695 = vld [vmem:[%s3 + $0x18] sm:$0xff]
        %697 = vset.pattern.permute.xlu0 0
        %698 = vperm.xlu0 %697, %v692
        %v699 = vpop.permute.xlu0 %698
        %702 = vset.pattern.permute.xlu0 0
        %703 = vperm.xlu0 %702, %v693
        %v704 = vpop.permute.xlu0 %703
        %707 = vset.pattern.permute.xlu0 0
        %708 = vperm.xlu0 %707, %v694
        %v709 = vpop.permute.xlu0 %708
        %712 = vset.pattern.permute.xlu0 0
        %713 = vperm.xlu0 %712, %v695
        %v714 = vpop.permute.xlu0 %713
        %v716 = vmul.f32 %v688, %v699
        %v717 = vmul.f32 %v689, %v704
        %v718 = vmul.f32 %v690, %v709
        %v719 = vmul.f32 %v691, %v714
        %v720 = vld [vmem:[%s4] sm:$0xff]
        %v721 = vld [vmem:[%s4 + $0x8] sm:$0xff]
        %v722 = vld [vmem:[%s4 + $0x10] sm:$0xff]
        %v723 = vld [vmem:[%s4 + $0x18] sm:$0xff]
        %725 = vset.pattern.permute.xlu0 0
        %726 = vperm.xlu0 %725, %v720
        %v727 = vpop.permute.xlu0 %726
        %730 = vset.pattern.permute.xlu0 0
        %731 = vperm.xlu0 %730, %v721
        %v732 = vpop.permute.xlu0 %731
        %735 = vset.pattern.permute.xlu0 0
        %736 = vperm.xlu0 %735, %v722
        %v737 = vpop.permute.xlu0 %736
        %740 = vset.pattern.permute.xlu0 0
        %741 = vperm.xlu0 %740, %v723
        %v742 = vpop.permute.xlu0 %741
        %v744 = vadd.f32 %v716, %v727
        %v745 = vadd.f32 %v717, %v732
        %v746 = vadd.f32 %v718, %v737
        %v747 = vadd.f32 %v719, %v742
        %748 = vst [vmem:[%s256] sm:$0xff] %v744
        %749 = vst [vmem:[%s256 + $0x8] sm:$0xff] %v745
        %750 = vst [vmem:[%s256 + $0x10] sm:$0xff] %v746
        %751 = vst [vmem:[%s256 + $0x18] sm:$0xff] %v747
        %s752 = sand.u32 %s154, 1
        %s753 = scalar_lea.sflag [#allocation4], %s752
        %s754 = sand.u32 %s154, 1
        %s755 = smul.addr %s754, 32
        %s756 = scalar_lea.vmem [#allocation5], %s755
        // Predicated region
        $region45: #{tpu_custom_call.1} parent=39 // pred_check
          %p757 = pneg %p164
        $region46: #{tpu_custom_call.1} parent=39 // pred_check_branch
          %759 = sbr.rel (%p757) target = $region48
        $region47: #{tpu_custom_call.1} parent=39 // pred_region
          %s761 = ssub.s32 512, 512
          %762 = vsyncadd %s753, %s761
          %s763 = smul.addr %s26, 4
          %s764 = sadd.s32 %s27, %s763
          %s765 = smul.addr %s764, 128
          %s766 = scalar_lea.hbm %s5, %s765
          %s767 = sshll.u32 %s756, 4
          %s768 = int_to_ptr.vmem [resolvable:$true] %s767
          %773 = dma.vmem_to_hbm [thread:$0]  %s768, 512, %s766, %s753, 128, 128, 8
        $region48: #{tpu_custom_call.1} parent=39 // pred_fallthru
          _
      $region40: #{tpu_custom_call.1} parent=5 // pred_fallthru
        _
      %p774 = scmp.le.s32.totalorder 2, %s17
      // Predicated region
      $region49: #{tpu_custom_call.1} parent=5 // pred_check
        %p775 = pneg %p774
      $region50: #{tpu_custom_call.1} parent=5 // pred_check_branch
        %777 = sbr.rel (%p775) target = $region52
      $region51: #{tpu_custom_call.1} parent=5 // pred_region
        %s778 = ssub.s32 %s17, 2
        // Predicated region
        $region53: #{tpu_custom_call.1} parent=51 // pred_check
          %p779 = pneg %p170
        $region54: #{tpu_custom_call.1} parent=51 // pred_check_branch
          %781 = sbr.rel (%p779) target = $region56
        $region55: #{tpu_custom_call.1} parent=51 // pred_region
          %s782 = sand.u32 %s155, 1
          %s783 = scalar_lea.sflag [#allocation4], %s782
          %s784 = sand.u32 %s155, 1
          %s785 = smul.addr %s784, 32
          %s786 = scalar_lea.vmem [#allocation5], %s785
          %787 = dma.done %s783, 512
        $region56: #{tpu_custom_call.1} parent=51 // pred_fallthru
          _
      $region52: #{tpu_custom_call.1} parent=5 // pred_fallthru
        _
    $region6: #{tpu_custom_call.1} parent=1 // loop_footer
      %s21 = sadd.s32 1, %s17
    $region7: #{tpu_custom_call.1} parent=1 // loop_footer_branch
      %16 = sbr.rel target = $region3
    $region8: #{tpu_custom_call.1} parent=1 // loop_exit
      _
    %788 = vsyncpa [#allocation3], 1
    %s789 = scalar_lea.sflag [#allocation3], 1
    %790 = vsyncpa %s789, 1
    %791 = vsyncpa [#allocation4], 1
    %s792 = scalar_lea.sflag [#allocation4], 1
    %793 = vsyncpa %s792, 1

</llo_original>
